<compile_context>
chip_gen: v7x
topology: tpu7x:2x2x1
jax: 0.10.0
libtpu: 0.0.40
codegen_flags: <defaults>
</compile_context>

<pallas_src>
import jax
import jax.numpy as jnp
from jax.experimental import pallas as pl
from jax.experimental.pallas import tpu as pltpu

BN_EPS = 1e-5
LEAKY_SLOPE = 0.01
LANE = 128


def policy_kernel(x_ref, w1_ref, params_ref, w2_ref, out_ref):
    # ---- Linear(obs_size, hidden_size, bias=False) -------------------------
    x = x_ref[...]                                                    # (B, obs)
    h = jnp.dot(x, w1_ref[...], preferred_element_type=jnp.float32)  # (B, H)

    B, H = h.shape
    n_pad = out_ref.shape[1]

    # ---- BatchNorm1d (training mode, biased variance), folded form ----------
    inv_b = 1.0 / float(B)
    mean = jnp.sum(h, axis=0, keepdims=True) * inv_b                  # (1, H)
    mean_sq = jnp.sum(h * h, axis=0, keepdims=True) * inv_b           # (1, H)
    var = mean_sq - mean * mean                                       # one pass

    gamma = params_ref[0:1, 0:H]                                      # (1, H)
    beta = params_ref[1:2, 0:H]                                       # (1, H)
    b2 = params_ref[2:3, 0:n_pad]                                     # (1, Np)

    scale = gamma * jax.lax.rsqrt(var + BN_EPS)                       # (1, H)
    shift = beta - mean * scale                                       # (1, H)
    h_bn = h * scale + shift                                          # (B, H)

    # ---- LeakyReLU (slope in (0,1) => max form is exact) --------------------
    h_act = jnp.maximum(h_bn, LEAKY_SLOPE * h_bn)

    # ---- Linear(hidden_size, n_actions) + bias, lane-padded output ----------
    logits = jnp.dot(h_act, w2_ref[...], preferred_element_type=jnp.float32)
    out_ref[...] = (logits + b2).astype(out_ref.dtype)


def _round_up(n, m):
    return ((n + m - 1) // m) * m


def pack_params(w1, gamma, beta, w2, b2):
    """One-time packing of the small per-feature params / second-layer weight.

    Returns (w1, params, w2_padded, n_actions) where:
      params    : (3, P) f32 — row0 gamma, row1 beta, row2 bias (lane-padded)
      w2_padded : (H, N_pad) f32 — lane-padded to a multiple of 128
    """
    H, n_actions = w2.shape
    n_pad = _round_up(max(n_actions, 1), LANE)
    p = max(_round_up(H, LANE), n_pad)

    params = jnp.zeros((3, p), jnp.float32)
    params = params.at[0, :H].set(gamma.reshape(-1))
    params = params.at[1, :H].set(beta.reshape(-1))
    params = params.at[2, :n_actions].set(b2.reshape(-1))

    w2p = jnp.zeros((H, n_pad), jnp.float32).at[:, :n_actions].set(w2)
    return w1, params, w2p, n_actions


def policy_forward(x, w1, params, w2p, n_actions):
    """x: (B, obs_size) f32. Returns (B, n_actions) f32 logits.

    Prefer B a multiple of 8 (f32 sublanes); B should be the *real* batch —
    do not zero-pad rows, BatchNorm statistics are computed over all rows.
    """
    batch = x.shape[0]
    n_pad = w2p.shape[1]
    vmem = pl.BlockSpec(memory_space=pltpu.MemorySpace.VMEM)
    out_padded = pl.pallas_call(
        policy_kernel,
        out_shape=jax.ShapeDtypeStruct((batch, n_pad), jnp.float32),
        in_specs=[vmem, vmem, vmem, vmem],
        out_specs=vmem,
    )(x, w1, params, w2p)
    return out_padded[:, :n_actions]


def init_params(key, obs_size, hidden_size, n_actions):
    """Deterministic, PyTorch-style (kaiming-uniform bounds) initialization."""
    k1, k2, k3 = jax.random.split(key, 3)
    bound1 = 1.0 / jnp.sqrt(obs_size)
    bound2 = 1.0 / jnp.sqrt(hidden_size)
    # stored as [in, out] (transpose of PyTorch's [out, in])
    w1 = jax.random.uniform(k1, (obs_size, hidden_size), jnp.float32,
                            -bound1, bound1)
    w2 = jax.random.uniform(k2, (hidden_size, n_actions), jnp.float32,
                            -bound2, bound2)
    b2 = jax.random.uniform(k3, (1, n_actions), jnp.float32, -bound2, bound2)
    gamma = jnp.ones((1, hidden_size), jnp.float32)   # BN weight init = 1
    beta = jnp.zeros((1, hidden_size), jnp.float32)   # BN bias   init = 0
    return w1, gamma, beta, w2, b2


def reference_forward(x, w1, gamma, beta, w2, b2):
    h = x @ w1
    mean = jnp.mean(h, axis=0, keepdims=True)
    var = jnp.mean((h - mean) ** 2, axis=0, keepdims=True)   # biased (PyTorch)
    h = (h - mean) / jnp.sqrt(var + BN_EPS) * gamma + beta
    h = jnp.where(h >= 0, h, LEAKY_SLOPE * h)
    return h @ w2 + b2


if __name__ == "__main__":
    # CartPole-like sizes: obs=4, hidden=32, actions=2.
    # Batch of 128 environment states per call (multiple of 8 sublanes) so the
    # fixed launch / DMA overhead is amortized.
    OBS_SIZE, HIDDEN_SIZE, N_ACTIONS, BATCH = 4, 32, 2, 128

    key = jax.random.PRNGKey(0)
    kx, kp = jax.random.split(key)
    x = jax.random.normal(kx, (BATCH, OBS_SIZE), dtype=jnp.float32)
    w1, gamma, beta, w2, b2 = init_params(kp, OBS_SIZE, HIDDEN_SIZE, N_ACTIONS)

    # Pack the small params once (4 input DMAs per call instead of 7).
    w1_k, params_k, w2p_k, n_act = pack_params(w1, gamma, beta, w2, b2)

    out = policy_forward(x, w1_k, params_k, w2p_k, n_act)
    out = jax.block_until_ready(out)

    ref = reference_forward(x, w1, gamma, beta, w2, b2)
    assert out.shape == (BATCH, N_ACTIONS)
    assert jnp.allclose(out, ref, atol=1e-4, rtol=1e-4), (out, ref)

    print("KERNEL_OK")
</pallas_src>

<mosaic_0001>
module attributes {stable_mosaic.version = 11 : i64} {
  func.func @policy_kernel(%arg0: memref<128x4xf32, #tpu.memory_space<vmem>>, %arg1: memref<4x32xf32, #tpu.memory_space<vmem>>, %arg2: memref<3x128xf32, #tpu.memory_space<vmem>>, %arg3: memref<32x128xf32, #tpu.memory_space<vmem>>, %arg4: memref<128x128xf32, #tpu.memory_space<vmem>>) attributes {dimension_semantics = [], scalar_prefetch = 0 : i64, scratch_operands = 0 : i64, tpu.core_type = #tpu.core_type<tc>} {
    %c0 = arith.constant 0 : index
    %c0_0 = arith.constant 0 : index
    %0 = vector.load %arg0[%c0, %c0_0] : memref<128x4xf32, #tpu.memory_space<vmem>>, vector<128x4xf32>
    %c0_1 = arith.constant 0 : index
    %c0_2 = arith.constant 0 : index
    %1 = vector.load %arg1[%c0_1, %c0_2] : memref<4x32xf32, #tpu.memory_space<vmem>>, vector<4x32xf32>
    %cst = arith.constant dense<0.000000e+00> : vector<128x32xf32>
    %2 = tpu.matmul %0, %1, %cst {dimension_numbers = #tpu.dot_dimension_numbers<[1], [0], [0], [1], [0, 0, 1, 1], [], []>} : vector<128x4xf32>, vector<4x32xf32>, vector<128x32xf32> -> vector<128x32xf32>
    %cst_3 = arith.constant dense<0.000000e+00> : vector<32xf32>
    %3 = vector.multi_reduction <add>, %2, %cst_3 [0] : vector<128x32xf32> to vector<32xf32>
    %4 = vector.shape_cast %3 : vector<32xf32> to vector<1x32xf32>
    %cst_4 = arith.constant 7.812500e-03 : f32
    %5 = vector.broadcast %cst_4 : f32 to vector<1x32xf32>
    %6 = arith.mulf %4, %5 : vector<1x32xf32>
    %7 = arith.mulf %2, %2 : vector<128x32xf32>
    %cst_5 = arith.constant dense<0.000000e+00> : vector<32xf32>
    %8 = vector.multi_reduction <add>, %7, %cst_5 [0] : vector<128x32xf32> to vector<32xf32>
    %9 = vector.shape_cast %8 : vector<32xf32> to vector<1x32xf32>
    %cst_6 = arith.constant 7.812500e-03 : f32
    %10 = vector.broadcast %cst_6 : f32 to vector<1x32xf32>
    %11 = arith.mulf %9, %10 : vector<1x32xf32>
    %12 = arith.mulf %6, %6 : vector<1x32xf32>
    %13 = arith.subf %11, %12 : vector<1x32xf32>
    %c0_7 = arith.constant 0 : index
    %c0_8 = arith.constant 0 : index
    %14 = vector.load %arg2[%c0_7, %c0_8] : memref<3x128xf32, #tpu.memory_space<vmem>>, vector<1x32xf32>
    %c1 = arith.constant 1 : index
    %c0_9 = arith.constant 0 : index
    %15 = vector.load %arg2[%c1, %c0_9] : memref<3x128xf32, #tpu.memory_space<vmem>>, vector<1x32xf32>
    %c2 = arith.constant 2 : index
    %c0_10 = arith.constant 0 : index
    %16 = vector.load %arg2[%c2, %c0_10] : memref<3x128xf32, #tpu.memory_space<vmem>>, vector<1x128xf32>
    %cst_11 = arith.constant 9.99999974E-6 : f32
    %17 = vector.broadcast %cst_11 : f32 to vector<1x32xf32>
    %18 = arith.addf %13, %17 : vector<1x32xf32>
    %19 = math.rsqrt %18 : vector<1x32xf32>
    %20 = arith.mulf %14, %19 : vector<1x32xf32>
    %21 = arith.mulf %6, %20 : vector<1x32xf32>
    %22 = arith.subf %15, %21 : vector<1x32xf32>
    %23 = vector.broadcast %20 : vector<1x32xf32> to vector<128x32xf32>
    %24 = arith.mulf %2, %23 : vector<128x32xf32>
    %25 = vector.broadcast %22 : vector<1x32xf32> to vector<128x32xf32>
    %26 = arith.addf %24, %25 : vector<128x32xf32>
    %cst_12 = arith.constant 0.00999999977 : f32
    %27 = vector.broadcast %cst_12 : f32 to vector<128x32xf32>
    %28 = arith.mulf %27, %26 : vector<128x32xf32>
    %29 = arith.maximumf %26, %28 : vector<128x32xf32>
    %c0_13 = arith.constant 0 : index
    %c0_14 = arith.constant 0 : index
    %30 = vector.load %arg3[%c0_13, %c0_14] : memref<32x128xf32, #tpu.memory_space<vmem>>, vector<32x128xf32>
    %cst_15 = arith.constant dense<0.000000e+00> : vector<128x128xf32>
    %31 = tpu.matmul %29, %30, %cst_15 {dimension_numbers = #tpu.dot_dimension_numbers<[1], [0], [0], [1], [0, 0, 1, 1], [], []>} : vector<128x32xf32>, vector<32x128xf32>, vector<128x128xf32> -> vector<128x128xf32>
    %32 = vector.broadcast %16 : vector<1x128xf32> to vector<128x128xf32>
    %33 = arith.addf %31, %32 : vector<128x128xf32>
    %c0_16 = arith.constant 0 : index
    %c0_17 = arith.constant 0 : index
    %34 = vector.load %arg4[%c0_16, %c0_17] : memref<128x128xf32, #tpu.memory_space<vmem>>, vector<128x128xf32>
    tpu.vector_store %arg4[%c0_16, %c0_17], %33 {strides = array<i32>} : memref<128x128xf32, #tpu.memory_space<vmem>>, vector<128x128xf32>,
    return
  }
}

</mosaic_0001>

<llo_original>
// kernel: tpu_custom_call.1
$region0: #{tpu_custom_call.1}
  #allocation0 [shape = 'u32[]', space=smem, size = 0x4, offset = 0x4, fixed_abs, tag = 'smem constant byte address 0x4 - core index']
  #allocation1 [shape = 'u32[144,128]{1,0:T(1,128)}', space=vmem, size = 0x12000, scoped, tag = 'internal scratch']
  %s0 = inlined_call_operand.vmem [shape: f32[128,4], index: 0, kind: input, shape index: {}]
  %s1 = inlined_call_operand.vmem [shape: f32[4,32], index: 1, kind: input, shape index: {}]
  %s2 = inlined_call_operand.vmem [shape: f32[3,128], index: 2, kind: input, shape index: {}]
  %s3 = inlined_call_operand.vmem [shape: f32[32,128], index: 3, kind: input, shape index: {}]
  %s4 = inlined_call_operand.hbm [shape: f32[128,128], index: 4, kind: output, shape index: {}]
  %s5 = sld [smem:[#allocation0]]
  $region26: #{tpu_custom_call.1} parent=0
    _
  %s7 = ssub.s32 1, %s5
  %s8 = scalar_select 0, %s7, %s5
  $region1: #{tpu_custom_call.1} parent=0
    #allocation2 [shape = 'u8[65536]{0}', space=vmem, size = 0x10000, scoped, tag = 'output window, operand 0, single buffered']
    #allocation3 [shape = 's32[1]{0}', space=sflag, size = 0x4, scoped, tag = 'scoped memory for tpu_custom_call.1']
    %9 = vsyncpa [#allocation3], 0
    // Predicated region
    $region2: #{tpu_custom_call.1} parent=1 // pred_check
      _
    $region3: #{tpu_custom_call.1} parent=1 // pred_check_branch
      %11 = sbr.rel (0) target = $region5
    $region4: #{tpu_custom_call.1} parent=1 // pred_region
      _
    $region5: #{tpu_custom_call.1} parent=1 // pred_fallthru
      _
    // Predicated region
    $region6: #{tpu_custom_call.1} parent=1 // pred_check
      _
    $region7: #{tpu_custom_call.1} parent=1 // pred_check_branch
      %13 = sbr.rel (0) target = $region9
    $region8: #{tpu_custom_call.1} parent=1 // pred_region
      _
    $region9: #{tpu_custom_call.1} parent=1 // pred_fallthru
      _
    // Predicated region
    $region10: #{tpu_custom_call.1} parent=1 // pred_check
      _
    $region11: #{tpu_custom_call.1} parent=1 // pred_check_branch
      %15 = sbr.rel (0) target = $region13
    $region12: #{tpu_custom_call.1} parent=1 // pred_region
      _
    $region13: #{tpu_custom_call.1} parent=1 // pred_fallthru
      _
    // Predicated region
    $region14: #{tpu_custom_call.1} parent=1 // pred_check
      _
    $region15: #{tpu_custom_call.1} parent=1 // pred_check_branch
      %17 = sbr.rel (0) target = $region17
    $region16: #{tpu_custom_call.1} parent=1 // pred_region
      _
    $region17: #{tpu_custom_call.1} parent=1 // pred_fallthru
      _
    %v18 = vld [vmem:[%s0] sm:$0xff]
    %v19 = vld [vmem:[%s0 + $0x8] sm:$0xff]
    %v20 = vld [vmem:[%s0 + $0x10] sm:$0xff]
    %v21 = vld [vmem:[%s0 + $0x18] sm:$0xff]
    %v22 = vld [vmem:[%s0 + $0x20] sm:$0xff]
    %v23 = vld [vmem:[%s0 + $0x28] sm:$0xff]
    %v24 = vld [vmem:[%s0 + $0x30] sm:$0xff]
    %v25 = vld [vmem:[%s0 + $0x38] sm:$0xff]
    %v26 = vld [vmem:[%s0 + $0x40] sm:$0xff]
    %v27 = vld [vmem:[%s0 + $0x48] sm:$0xff]
    %v28 = vld [vmem:[%s0 + $0x50] sm:$0xff]
    %v29 = vld [vmem:[%s0 + $0x58] sm:$0xff]
    %v30 = vld [vmem:[%s0 + $0x60] sm:$0xff]
    %v31 = vld [vmem:[%s0 + $0x68] sm:$0xff]
    %v32 = vld [vmem:[%s0 + $0x70] sm:$0xff]
    %v33 = vld [vmem:[%s0 + $0x78] sm:$0xff]
    %v34 = vld [vmem:[%s1] sm:$0xf]
    %vm35 = vcmask 31744
    %v37 = vsel %vm35, %v18, 0
    %v40 = vsel %vm35, %v19, 0
    %v43 = vsel %vm35, %v20, 0
    %v46 = vsel %vm35, %v21, 0
    %v49 = vsel %vm35, %v22, 0
    %v52 = vsel %vm35, %v23, 0
    %v55 = vsel %vm35, %v24, 0
    %v58 = vsel %vm35, %v25, 0
    %v61 = vsel %vm35, %v26, 0
    %v64 = vsel %vm35, %v27, 0
    %v67 = vsel %vm35, %v28, 0
    %v70 = vsel %vm35, %v29, 0
    %v73 = vsel %vm35, %v30, 0
    %v76 = vsel %vm35, %v31, 0
    %v79 = vsel %vm35, %v32, 0
    %v82 = vsel %vm35, %v33, 0
    %vm84 = vcmask 1043456
    %v86 = vsel %vm84, %v34, 0
    %88 = vmatprep.subr.mxu0 0.0
    %89 = vmatpush1.msra.mxu0 %v86
    %90 = vmatprep.subr.mxu0 0.0
    %91 = vmatpush1.msra.mxu0 0.0
    %92 = vmatprep.subr.mxu0 0.0
    %93 = vmatpush1.msra.mxu0 0.0
    %94 = vmatprep.subr.mxu0 0.0
    %95 = vmatpush1.msra.mxu0 0.0
    %96 = vmatprep.subr.mxu0 0.0
    %97 = vmatpush1.msra.mxu0 0.0
    %98 = vmatprep.subr.mxu0 0.0
    %99 = vmatpush1.msra.mxu0 0.0
    %100 = vmatprep.subr.mxu0 0.0
    %101 = vmatpush1.msra.mxu0 0.0
    %102 = vmatprep.subr.mxu0 0.0
    %103 = vmatpush1.msra.mxu0 0.0
    %104 = vmatprep.subr.mxu0 0.0
    %105 = vmatpush1.msra.mxu0 0.0
    %106 = vmatprep.subr.mxu0 0.0
    %107 = vmatpush1.msra.mxu0 0.0
    %108 = vmatprep.subr.mxu0 0.0
    %109 = vmatpush1.msra.mxu0 0.0
    %110 = vmatprep.subr.mxu0 0.0
    %111 = vmatpush1.msra.mxu0 0.0
    %112 = vmatprep.subr.mxu0 0.0
    %113 = vmatpush1.msra.mxu0 0.0
    %114 = vmatprep.subr.mxu0 0.0
    %115 = vmatpush1.msra.mxu0 0.0
    %116 = vmatprep.subr.mxu0 0.0
    %117 = vmatpush1.msra.mxu0 0.0
    %118 = vmatprep.subr.mxu0 0.0
    %119 = vmatpush1.msra.mxu0 0.0
    %120 = vmatprep.subr.mxu0 0.0
    %121 = vmatpush1.msra.mxu0 0.0
    %122 = vmatprep.subr.mxu0 0.0
    %123 = vmatpush1.msra.mxu0 0.0
    %124 = vmatprep.subr.mxu0 0.0
    %125 = vmatpush1.msra.mxu0 0.0
    %126 = vmatprep.subr.mxu0 0.0
    %127 = vmatpush1.msra.mxu0 0.0
    %128 = vmatprep.subr.mxu0 0.0
    %129 = vmatpush1.msra.mxu0 0.0
    %130 = vmatprep.subr.mxu0 0.0
    %131 = vmatpush1.msra.mxu0 0.0
    %132 = vmatprep.subr.mxu0 0.0
    %133 = vmatpush1.msra.mxu0 0.0
    %134 = vmatprep.subr.mxu0 0.0
    %135 = vmatpush1.msra.mxu0 0.0
    %136 = vmatprep.subr.mxu0 0.0
    %137 = vmatpush1.msra.mxu0 0.0
    %138 = vmatprep.subr.mxu0 0.0
    %139 = vmatpush1.msra.mxu0 0.0
    %140 = vmatprep.subr.mxu0 0.0
    %141 = vmatpush1.msra.mxu0 0.0
    %142 = vmatprep.subr.mxu0 0.0
    %143 = vmatpush1.msra.mxu0 0.0
    %144 = vmatprep.subr.mxu0 0.0
    %145 = vmatpush1.msra.mxu0 0.0
    %146 = vmatprep.subr.mxu0 0.0
    %147 = vmatpush1.msra.mxu0 0.0
    %148 = vmatprep.subr.mxu0 0.0
    %149 = vmatpush1.msra.mxu0 0.0
    %150 = vmatprep.subr.mxu0 0.0
    %151 = vmatpush1.msra.mxu0 0.0
    %152 = vmatprep.mubr.f32.mxu0 0.0
    %153 = vmatmul.mubr.f32.gmra.mrb[0].mxu0 %v37
    %v154 = vpop.f32.mrb[0].mxu0
    %v155 = vadd.f32 0.0, %v154
    %v156 = vpop.f32.mrb[0].mxu0
    %157 = vmatprep.mubr.f32.mxu0 0.0
    %158 = vmatmul.mubr.f32.gmra.mrb[0].mxu0 %v40
    %v159 = vpop.f32.mrb[0].mxu0
    %v160 = vadd.f32 0.0, %v159
    %v161 = vpop.f32.mrb[0].mxu0
    %162 = vmatprep.mubr.f32.mxu0 0.0
    %163 = vmatmul.mubr.f32.gmra.mrb[0].mxu0 %v43
    %v164 = vpop.f32.mrb[0].mxu0
    %v165 = vadd.f32 0.0, %v164
    %v166 = vpop.f32.mrb[0].mxu0
    %167 = vmatprep.mubr.f32.mxu0 0.0
    %168 = vmatmul.mubr.f32.gmra.mrb[0].mxu0 %v46
    %v169 = vpop.f32.mrb[0].mxu0
    %v170 = vadd.f32 0.0, %v169
    %v171 = vpop.f32.mrb[0].mxu0
    %172 = vmatprep.mubr.f32.mxu0 0.0
    %173 = vmatmul.mubr.f32.gmra.mrb[0].mxu0 %v49
    %v174 = vpop.f32.mrb[0].mxu0
    %v175 = vadd.f32 0.0, %v174
    %v176 = vpop.f32.mrb[0].mxu0
    %177 = vmatprep.mubr.f32.mxu0 0.0
    %178 = vmatmul.mubr.f32.gmra.mrb[0].mxu0 %v52
    %v179 = vpop.f32.mrb[0].mxu0
    %v180 = vadd.f32 0.0, %v179
    %v181 = vpop.f32.mrb[0].mxu0
    %182 = vmatprep.mubr.f32.mxu0 0.0
    %183 = vmatmul.mubr.f32.gmra.mrb[0].mxu0 %v55
    %v184 = vpop.f32.mrb[0].mxu0
    %v185 = vadd.f32 0.0, %v184
    %v186 = vpop.f32.mrb[0].mxu0
    %187 = vmatprep.mubr.f32.mxu0 0.0
    %188 = vmatmul.mubr.f32.gmra.mrb[0].mxu0 %v58
    %v189 = vpop.f32.mrb[0].mxu0
    %v190 = vadd.f32 0.0, %v189
    %v191 = vpop.f32.mrb[0].mxu0
    %192 = vmatprep.mubr.f32.mxu0 0.0
    %193 = vmatmul.mubr.f32.gmra.mrb[0].mxu0 %v61
    %v194 = vpop.f32.mrb[0].mxu0
    %v195 = vadd.f32 0.0, %v194
    %v196 = vpop.f32.mrb[0].mxu0
    %197 = vmatprep.mubr.f32.mxu0 0.0
    %198 = vmatmul.mubr.f32.gmra.mrb[0].mxu0 %v64
    %v199 = vpop.f32.mrb[0].mxu0
    %v200 = vadd.f32 0.0, %v199
    %v201 = vpop.f32.mrb[0].mxu0
    %202 = vmatprep.mubr.f32.mxu0 0.0
    %203 = vmatmul.mubr.f32.gmra.mrb[0].mxu0 %v67
    %v204 = vpop.f32.mrb[0].mxu0
    %v205 = vadd.f32 0.0, %v204
    %v206 = vpop.f32.mrb[0].mxu0
    %207 = vmatprep.mubr.f32.mxu0 0.0
    %208 = vmatmul.mubr.f32.gmra.mrb[0].mxu0 %v70
    %v209 = vpop.f32.mrb[0].mxu0
    %v210 = vadd.f32 0.0, %v209
    %v211 = vpop.f32.mrb[0].mxu0
    %212 = vmatprep.mubr.f32.mxu0 0.0
    %213 = vmatmul.mubr.f32.gmra.mrb[0].mxu0 %v73
    %v214 = vpop.f32.mrb[0].mxu0
    %v215 = vadd.f32 0.0, %v214
    %v216 = vpop.f32.mrb[0].mxu0
    %217 = vmatprep.mubr.f32.mxu0 0.0
    %218 = vmatmul.mubr.f32.gmra.mrb[0].mxu0 %v76
    %v219 = vpop.f32.mrb[0].mxu0
    %v220 = vadd.f32 0.0, %v219
    %v221 = vpop.f32.mrb[0].mxu0
    %222 = vmatprep.mubr.f32.mxu0 0.0
    %223 = vmatmul.mubr.f32.gmra.mrb[0].mxu0 %v79
    %v224 = vpop.f32.mrb[0].mxu0
    %v225 = vadd.f32 0.0, %v224
    %v226 = vpop.f32.mrb[0].mxu0
    %227 = vmatprep.mubr.f32.mxu0 0.0
    %228 = vmatmul.mubr.f32.gmra.mrb[0].mxu0 %v82
    %v229 = vpop.f32.mrb[0].mxu0
    %v230 = vadd.f32 0.0, %v229
    %v231 = vpop.f32.mrb[0].mxu0
    %232 = vdwg.mxu0
    %vm233 = vcmask 261120
    %v234 = vsel %vm233, %v155, 0.0
    %v235 = vsel %vm233, %v160, 0.0
    %v236 = vadd.f32 %v234, %v235
    %v237 = vsel %vm233, %v165, 0.0
    %v238 = vadd.f32 %v236, %v237
    %v239 = vsel %vm233, %v170, 0.0
    %v240 = vadd.f32 %v238, %v239
    %v241 = vsel %vm233, %v175, 0.0
    %v242 = vadd.f32 %v240, %v241
    %v243 = vsel %vm233, %v180, 0.0
    %v244 = vadd.f32 %v242, %v243
    %v245 = vsel %vm233, %v185, 0.0
    %v246 = vadd.f32 %v244, %v245
    %v247 = vsel %vm233, %v190, 0.0
    %v248 = vadd.f32 %v246, %v247
    %v249 = vsel %vm233, %v195, 0.0
    %v250 = vadd.f32 %v248, %v249
    %v251 = vsel %vm233, %v200, 0.0
    %v252 = vadd.f32 %v250, %v251
    %v253 = vsel %vm233, %v205, 0.0
    %v254 = vadd.f32 %v252, %v253
    %v255 = vsel %vm233, %v210, 0.0
    %v256 = vadd.f32 %v254, %v255
    %v257 = vsel %vm233, %v215, 0.0
    %v258 = vadd.f32 %v256, %v257
    %v259 = vsel %vm233, %v220, 0.0
    %v260 = vadd.f32 %v258, %v259
    %v261 = vsel %vm233, %v225, 0.0
    %v262 = vadd.f32 %v260, %v261
    %v263 = vsel %vm233, %v230, 0.0
    %v264 = vadd.f32 %v262, %v263
    %v265 = vrot.slane %v264, 4
    %v266 = vadd.f32 %v264, %v265
    %v267 = vrot.slane %v266, 2
    %v268 = vadd.f32 %v266, %v267
    %v269 = vrot.slane %v268, 1
    %v270 = vadd.f32 %v268, %v269
    %v271 = vmul.f32 %v270, 0.0078125
    %v272 = vmul.f32 %v155, %v155
    %v273 = vmul.f32 %v160, %v160
    %v274 = vmul.f32 %v165, %v165
    %v275 = vmul.f32 %v170, %v170
    %v276 = vmul.f32 %v175, %v175
    %v277 = vmul.f32 %v180, %v180
    %v278 = vmul.f32 %v185, %v185
    %v279 = vmul.f32 %v190, %v190
    %v280 = vmul.f32 %v195, %v195
    %v281 = vmul.f32 %v200, %v200
    %v282 = vmul.f32 %v205, %v205
    %v283 = vmul.f32 %v210, %v210
    %v284 = vmul.f32 %v215, %v215
    %v285 = vmul.f32 %v220, %v220
    %v286 = vmul.f32 %v225, %v225
    %v287 = vmul.f32 %v230, %v230
    %v288 = vsel %vm233, %v272, 0.0
    %v289 = vsel %vm233, %v273, 0.0
    %v290 = vadd.f32 %v288, %v289
    %v291 = vsel %vm233, %v274, 0.0
    %v292 = vadd.f32 %v290, %v291
    %v293 = vsel %vm233, %v275, 0.0
    %v294 = vadd.f32 %v292, %v293
    %v295 = vsel %vm233, %v276, 0.0
    %v296 = vadd.f32 %v294, %v295
    %v297 = vsel %vm233, %v277, 0.0
    %v298 = vadd.f32 %v296, %v297
    %v299 = vsel %vm233, %v278, 0.0
    %v300 = vadd.f32 %v298, %v299
    %v301 = vsel %vm233, %v279, 0.0
    %v302 = vadd.f32 %v300, %v301
    %v303 = vsel %vm233, %v280, 0.0
    %v304 = vadd.f32 %v302, %v303
    %v305 = vsel %vm233, %v281, 0.0
    %v306 = vadd.f32 %v304, %v305
    %v307 = vsel %vm233, %v282, 0.0
    %v308 = vadd.f32 %v306, %v307
    %v309 = vsel %vm233, %v283, 0.0
    %v310 = vadd.f32 %v308, %v309
    %v311 = vsel %vm233, %v284, 0.0
    %v312 = vadd.f32 %v310, %v311
    %v313 = vsel %vm233, %v285, 0.0
    %v314 = vadd.f32 %v312, %v313
    %v315 = vsel %vm233, %v286, 0.0
    %v316 = vadd.f32 %v314, %v315
    %v317 = vsel %vm233, %v287, 0.0
    %v318 = vadd.f32 %v316, %v317
    %v319 = vrot.slane %v318, 4
    %v320 = vadd.f32 %v318, %v319
    %v321 = vrot.slane %v320, 2
    %v322 = vadd.f32 %v320, %v321
    %v323 = vrot.slane %v322, 1
    %v324 = vadd.f32 %v322, %v323
    %v325 = vmul.f32 %v324, 0.0078125
    %v326 = vmul.f32 %v271, %v271
    %v327 = vsub.f32 %v325, %v326
    %v328 = vld [vmem:[%s2] sm:$0x1]
    %v329 = vld [vmem:[%s2 + $0x1] sm:$0x1]
    %v330 = vld [vmem:[%s2 + $0x2] sm:$0x1]
    %v331 = vadd.f32 %v327, 1e-05
    %v332 = vrsqrt.pop %v331
    %v333 = vmul.f32 %v328, %v332
    %v334 = vmul.f32 %v271, %v333
    %v335 = vsub.f32 %v329, %v334
    %v336 = vlaneseq
    %v337 = vshrl.u32 %v336, 7
    %v338 = vsub.s32 0, %v337
    %v339 = vrot.slane %v333, %v338
    %v340 = vmul.f32 %v155, %v339
    %v341 = vmul.f32 %v160, %v339
    %v342 = vmul.f32 %v165, %v339
    %v343 = vmul.f32 %v170, %v339
    %v344 = vmul.f32 %v175, %v339
    %v345 = vmul.f32 %v180, %v339
    %v346 = vmul.f32 %v185, %v339
    %v347 = vmul.f32 %v190, %v339
    %v348 = vmul.f32 %v195, %v339
    %v349 = vmul.f32 %v200, %v339
    %v350 = vmul.f32 %v205, %v339
    %v351 = vmul.f32 %v210, %v339
    %v352 = vmul.f32 %v215, %v339
    %v353 = vmul.f32 %v220, %v339
    %v354 = vmul.f32 %v225, %v339
    %v355 = vmul.f32 %v230, %v339
    %v356 = vlaneseq
    %v357 = vshrl.u32 %v356, 7
    %v358 = vsub.s32 0, %v357
    %v359 = vrot.slane %v335, %v358
    %v360 = vadd.f32 %v340, %v359
    %v361 = vadd.f32 %v341, %v359
    %v362 = vadd.f32 %v342, %v359
    %v363 = vadd.f32 %v343, %v359
    %v364 = vadd.f32 %v344, %v359
    %v365 = vadd.f32 %v345, %v359
    %v366 = vadd.f32 %v346, %v359
    %v367 = vadd.f32 %v347, %v359
    %v368 = vadd.f32 %v348, %v359
    %v369 = vadd.f32 %v349, %v359
    %v370 = vadd.f32 %v350, %v359
    %v371 = vadd.f32 %v351, %v359
    %v372 = vadd.f32 %v352, %v359
    %v373 = vadd.f32 %v353, %v359
    %v374 = vadd.f32 %v354, %v359
    %v375 = vadd.f32 %v355, %v359
    %v376 = vmul.f32 %v360, 0.01
    %v377 = vmul.f32 %v361, 0.01
    %v378 = vmul.f32 %v362, 0.01
    %v379 = vmul.f32 %v363, 0.01
    %v380 = vmul.f32 %v364, 0.01
    %v381 = vmul.f32 %v365, 0.01
    %v382 = vmul.f32 %v366, 0.01
    %v383 = vmul.f32 %v367, 0.01
    %v384 = vmul.f32 %v368, 0.01
    %v385 = vmul.f32 %v369, 0.01
    %v386 = vmul.f32 %v370, 0.01
    %v387 = vmul.f32 %v371, 0.01
    %v388 = vmul.f32 %v372, 0.01
    %v389 = vmul.f32 %v373, 0.01
    %v390 = vmul.f32 %v374, 0.01
    %v391 = vmul.f32 %v375, 0.01
    %v392 = vmax.f32 %v360, %v376
    %v393 = vmax.f32 %v361, %v377
    %v394 = vmax.f32 %v362, %v378
    %v395 = vmax.f32 %v363, %v379
    %v396 = vmax.f32 %v364, %v380
    %v397 = vmax.f32 %v365, %v381
    %v398 = vmax.f32 %v366, %v382
    %v399 = vmax.f32 %v367, %v383
    %v400 = vmax.f32 %v368, %v384
    %v401 = vmax.f32 %v369, %v385
    %v402 = vmax.f32 %v370, %v386
    %v403 = vmax.f32 %v371, %v387
    %v404 = vmax.f32 %v372, %v388
    %v405 = vmax.f32 %v373, %v389
    %v406 = vmax.f32 %v374, %v390
    %v407 = vmax.f32 %v375, %v391
    %v408 = vld [vmem:[%s3] sm:$0xff]
    %v409 = vld [vmem:[%s3 + $0x8] sm:$0xff]
    %v410 = vld [vmem:[%s3 + $0x10] sm:$0xff]
    %v411 = vld [vmem:[%s3 + $0x18] sm:$0xff]
    %v412 = vlaneseq
    %v413 = vshrl.u32 %v412, 7
    %v414 = vsub.s32 0, %v413
    %v415 = vrot.slane %v330, %v414
    %v417 = vsel %vm233, %v392, 0
    %v420 = vsel %vm233, %v393, 0
    %v423 = vsel %vm233, %v394, 0
    %v426 = vsel %vm233, %v395, 0
    %v429 = vsel %vm233, %v396, 0
    %v432 = vsel %vm233, %v397, 0
    %v435 = vsel %vm233, %v398, 0
    %v438 = vsel %vm233, %v399, 0
    %v441 = vsel %vm233, %v400, 0
    %v444 = vsel %vm233, %v401, 0
    %v447 = vsel %vm233, %v402, 0
    %v450 = vsel %vm233, %v403, 0
    %v453 = vsel %vm233, %v404, 0
    %v456 = vsel %vm233, %v405, 0
    %v459 = vsel %vm233, %v406, 0
    %v462 = vsel %vm233, %v407, 0
    %464 = vmatprep.subr.mxu0 0.0
    %465 = vmatpush1.msra.mxu0 %v408
    %466 = vmatprep.subr.mxu0 0.0
    %467 = vmatpush1.msra.mxu0 %v409
    %468 = vmatprep.subr.mxu0 0.0
    %469 = vmatpush1.msra.mxu0 %v410
    %470 = vmatprep.subr.mxu0 0.0
    %471 = vmatpush1.msra.mxu0 %v411
    %472 = vmatprep.subr.mxu0 0.0
    %473 = vmatpush1.msra.mxu0 0.0
    %474 = vmatprep.subr.mxu0 0.0
    %475 = vmatpush1.msra.mxu0 0.0
    %476 = vmatprep.subr.mxu0 0.0
    %477 = vmatpush1.msra.mxu0 0.0
    %478 = vmatprep.subr.mxu0 0.0
    %479 = vmatpush1.msra.mxu0 0.0
    %480 = vmatprep.subr.mxu0 0.0
    %481 = vmatpush1.msra.mxu0 0.0
    %482 = vmatprep.subr.mxu0 0.0
    %483 = vmatpush1.msra.mxu0 0.0
    %484 = vmatprep.subr.mxu0 0.0
    %485 = vmatpush1.msra.mxu0 0.0
    %486 = vmatprep.subr.mxu0 0.0
    %487 = vmatpush1.msra.mxu0 0.0
    %488 = vmatprep.subr.mxu0 0.0
    %489 = vmatpush1.msra.mxu0 0.0
    %490 = vmatprep.subr.mxu0 0.0
    %491 = vmatpush1.msra.mxu0 0.0
    %492 = vmatprep.subr.mxu0 0.0
    %493 = vmatpush1.msra.mxu0 0.0
    %494 = vmatprep.subr.mxu0 0.0
    %495 = vmatpush1.msra.mxu0 0.0
    %496 = vmatprep.subr.mxu0 0.0
    %497 = vmatpush1.msra.mxu0 0.0
    %498 = vmatprep.subr.mxu0 0.0
    %499 = vmatpush1.msra.mxu0 0.0
    %500 = vmatprep.subr.mxu0 0.0
    %501 = vmatpush1.msra.mxu0 0.0
    %502 = vmatprep.subr.mxu0 0.0
    %503 = vmatpush1.msra.mxu0 0.0
    %504 = vmatprep.subr.mxu0 0.0
    %505 = vmatpush1.msra.mxu0 0.0
    %506 = vmatprep.subr.mxu0 0.0
    %507 = vmatpush1.msra.mxu0 0.0
    %508 = vmatprep.subr.mxu0 0.0
    %509 = vmatpush1.msra.mxu0 0.0
    %510 = vmatprep.subr.mxu0 0.0
    %511 = vmatpush1.msra.mxu0 0.0
    %512 = vmatprep.subr.mxu0 0.0
    %513 = vmatpush1.msra.mxu0 0.0
    %514 = vmatprep.subr.mxu0 0.0
    %515 = vmatpush1.msra.mxu0 0.0
    %516 = vmatprep.subr.mxu0 0.0
    %517 = vmatpush1.msra.mxu0 0.0
    %518 = vmatprep.subr.mxu0 0.0
    %519 = vmatpush1.msra.mxu0 0.0
    %520 = vmatprep.subr.mxu0 0.0
    %521 = vmatpush1.msra.mxu0 0.0
    %522 = vmatprep.subr.mxu0 0.0
    %523 = vmatpush1.msra.mxu0 0.0
    %524 = vmatprep.subr.mxu0 0.0
    %525 = vmatpush1.msra.mxu0 0.0
    %526 = vmatprep.subr.mxu0 0.0
    %527 = vmatpush1.msra.mxu0 0.0
    %528 = vmatprep.mubr.f32.mxu0 0.0
    %529 = vmatmul.mubr.f32.gmra.mrb[0].mxu0 %v417
    %v530 = vpop.f32.mrb[0].mxu0
    %v531 = vadd.f32 %v415, %v530
    %v532 = vpop.f32.mrb[0].mxu0
    %533 = vmatprep.mubr.f32.mxu0 0.0
    %534 = vmatmul.mubr.f32.gmra.mrb[0].mxu0 %v420
    %v535 = vpop.f32.mrb[0].mxu0
    %v536 = vadd.f32 %v415, %v535
    %v537 = vpop.f32.mrb[0].mxu0
    %538 = vmatprep.mubr.f32.mxu0 0.0
    %539 = vmatmul.mubr.f32.gmra.mrb[0].mxu0 %v423
    %v540 = vpop.f32.mrb[0].mxu0
    %v541 = vadd.f32 %v415, %v540
    %v542 = vpop.f32.mrb[0].mxu0
    %543 = vmatprep.mubr.f32.mxu0 0.0
    %544 = vmatmul.mubr.f32.gmra.mrb[0].mxu0 %v426
    %v545 = vpop.f32.mrb[0].mxu0
    %v546 = vadd.f32 %v415, %v545
    %v547 = vpop.f32.mrb[0].mxu0
    %548 = vmatprep.mubr.f32.mxu0 0.0
    %549 = vmatmul.mubr.f32.gmra.mrb[0].mxu0 %v429
    %v550 = vpop.f32.mrb[0].mxu0
    %v551 = vadd.f32 %v415, %v550
    %v552 = vpop.f32.mrb[0].mxu0
    %553 = vmatprep.mubr.f32.mxu0 0.0
    %554 = vmatmul.mubr.f32.gmra.mrb[0].mxu0 %v432
    %v555 = vpop.f32.mrb[0].mxu0
    %v556 = vadd.f32 %v415, %v555
    %v557 = vpop.f32.mrb[0].mxu0
    %558 = vmatprep.mubr.f32.mxu0 0.0
    %559 = vmatmul.mubr.f32.gmra.mrb[0].mxu0 %v435
    %v560 = vpop.f32.mrb[0].mxu0
    %v561 = vadd.f32 %v415, %v560
    %v562 = vpop.f32.mrb[0].mxu0
    %563 = vmatprep.mubr.f32.mxu0 0.0
    %564 = vmatmul.mubr.f32.gmra.mrb[0].mxu0 %v438
    %v565 = vpop.f32.mrb[0].mxu0
    %v566 = vadd.f32 %v415, %v565
    %v567 = vpop.f32.mrb[0].mxu0
    %568 = vmatprep.mubr.f32.mxu0 0.0
    %569 = vmatmul.mubr.f32.gmra.mrb[0].mxu0 %v441
    %v570 = vpop.f32.mrb[0].mxu0
    %v571 = vadd.f32 %v415, %v570
    %v572 = vpop.f32.mrb[0].mxu0
    %573 = vmatprep.mubr.f32.mxu0 0.0
    %574 = vmatmul.mubr.f32.gmra.mrb[0].mxu0 %v444
    %v575 = vpop.f32.mrb[0].mxu0
    %v576 = vadd.f32 %v415, %v575
    %v577 = vpop.f32.mrb[0].mxu0
    %578 = vmatprep.mubr.f32.mxu0 0.0
    %579 = vmatmul.mubr.f32.gmra.mrb[0].mxu0 %v447
    %v580 = vpop.f32.mrb[0].mxu0
    %v581 = vadd.f32 %v415, %v580
    %v582 = vpop.f32.mrb[0].mxu0
    %583 = vmatprep.mubr.f32.mxu0 0.0
    %584 = vmatmul.mubr.f32.gmra.mrb[0].mxu0 %v450
    %v585 = vpop.f32.mrb[0].mxu0
    %v586 = vadd.f32 %v415, %v585
    %v587 = vpop.f32.mrb[0].mxu0
    %588 = vmatprep.mubr.f32.mxu0 0.0
    %589 = vmatmul.mubr.f32.gmra.mrb[0].mxu0 %v453
    %v590 = vpop.f32.mrb[0].mxu0
    %v591 = vadd.f32 %v415, %v590
    %v592 = vpop.f32.mrb[0].mxu0
    %593 = vmatprep.mubr.f32.mxu0 0.0
    %594 = vmatmul.mubr.f32.gmra.mrb[0].mxu0 %v456
    %v595 = vpop.f32.mrb[0].mxu0
    %v596 = vadd.f32 %v415, %v595
    %v597 = vpop.f32.mrb[0].mxu0
    %598 = vmatprep.mubr.f32.mxu0 0.0
    %599 = vmatmul.mubr.f32.gmra.mrb[0].mxu0 %v459
    %v600 = vpop.f32.mrb[0].mxu0
    %v601 = vadd.f32 %v415, %v600
    %v602 = vpop.f32.mrb[0].mxu0
    %603 = vmatprep.mubr.f32.mxu0 0.0
    %604 = vmatmul.mubr.f32.gmra.mrb[0].mxu0 %v462
    %v605 = vpop.f32.mrb[0].mxu0
    %v606 = vadd.f32 %v415, %v605
    %v607 = vpop.f32.mrb[0].mxu0
    %608 = vdwg.mxu0
    %609 = vst [vmem:[#allocation2] sm:$0xff] %v531
    %610 = vst [vmem:[#allocation2 + $0x8] sm:$0xff] %v536
    %611 = vst [vmem:[#allocation2 + $0x10] sm:$0xff] %v541
    %612 = vst [vmem:[#allocation2 + $0x18] sm:$0xff] %v546
    %613 = vst [vmem:[#allocation2 + $0x20] sm:$0xff] %v551
    %614 = vst [vmem:[#allocation2 + $0x28] sm:$0xff] %v556
    %615 = vst [vmem:[#allocation2 + $0x30] sm:$0xff] %v561
    %616 = vst [vmem:[#allocation2 + $0x38] sm:$0xff] %v566
    %617 = vst [vmem:[#allocation2 + $0x40] sm:$0xff] %v571
    %618 = vst [vmem:[#allocation2 + $0x48] sm:$0xff] %v576
    %619 = vst [vmem:[#allocation2 + $0x50] sm:$0xff] %v581
    %620 = vst [vmem:[#allocation2 + $0x58] sm:$0xff] %v586
    %621 = vst [vmem:[#allocation2 + $0x60] sm:$0xff] %v591
    %622 = vst [vmem:[#allocation2 + $0x68] sm:$0xff] %v596
    %623 = vst [vmem:[#allocation2 + $0x70] sm:$0xff] %v601
    %624 = vst [vmem:[#allocation2 + $0x78] sm:$0xff] %v606
    // Predicated region
    $region18: #{tpu_custom_call.1} parent=1 // pred_check
      _
    $region19: #{tpu_custom_call.1} parent=1 // pred_check_branch
      %626 = sbr.rel (0) target = $region21
    $region20: #{tpu_custom_call.1} parent=1 // pred_region
      %s628 = ssub.s32 2048, 2048
      %629 = vsyncadd [#allocation3], %s628
      %s630 = sshll.u32 [#allocation2], 4
      %s631 = int_to_ptr.vmem [resolvable:$true] %s630
      %636 = dma.vmem_to_hbm [thread:$0]  %s631, 2048, %s4, [#allocation3], 128, 128, 8
    $region21: #{tpu_custom_call.1} parent=1 // pred_fallthru
      _
    // Predicated region
    $region22: #{tpu_custom_call.1} parent=1 // pred_check
      _
    $region23: #{tpu_custom_call.1} parent=1 // pred_check_branch
      %638 = sbr.rel (0) target = $region25
    $region24: #{tpu_custom_call.1} parent=1 // pred_region
      %639 = dma.done [#allocation3], 2048
    $region25: #{tpu_custom_call.1} parent=1 // pred_fallthru
      _
    %640 = vsyncpa [#allocation3], 1

</llo_original>
